<compile_context>
chip_gen: v5e
topology: v5e:2x2
jax: 0.10.0
libtpu: 0.0.40
codegen_flags: <defaults>
</compile_context>

<pallas_src>
import jax
import jax.numpy as jnp
from jax.experimental import pallas as pl
from jax.experimental.pallas import tpu as pltpu


# ----------------------------- Pallas kernel ------------------------------ #

def _gfm_kernel(r2p_ref, pf_ref, v2p_ref, wr_ref, wp_ref, wv_ref, b_ref, out_ref):
    r2p = r2p_ref[...].astype(jnp.float32)   # (bn, C)
    pf  = pf_ref[...].astype(jnp.float32)    # (bn, C)
    v2p = v2p_ref[...].astype(jnp.float32)   # (bn, C)

    # three linear branches C -> 3, summed (matches r_w + p_w + v_w)
    logits = (jnp.dot(r2p, wr_ref[...], preferred_element_type=jnp.float32)
              + jnp.dot(pf,  wp_ref[...], preferred_element_type=jnp.float32)
              + jnp.dot(v2p, wv_ref[...], preferred_element_type=jnp.float32)
              + b_ref[...])                  # (bn, 3)

    # softmax over the 3 branch logits: lane reductions + EUP reciprocal
    m = jnp.max(logits, axis=-1, keepdims=True)
    e = jnp.exp(logits - m)
    inv = pl.reciprocal(jnp.sum(e, axis=-1, keepdims=True), approx=True)
    w = e * inv                              # (bn, 3)

    # weighted fusion of the three feature streams
    out_ref[...] = (r2p * w[:, 0:1] + pf * w[:, 1:2] + v2p * w[:, 2:3]
                    ).astype(out_ref.dtype)


def gfm_fuse_pallas(r2p, p_feats, v2p, wr, wp, wv, bias, *, bn=2048):
    """GFM fusion hot path.  All feature inputs are (N, C); output is (N, C)."""
    n, c = p_feats.shape

    if bn >= n:
        # single block covering the whole array (any N is valid this way)
        bn = n
    else:
        # tiles must be sublane (8) aligned when they do not span the full dim
        bn = max(8, (bn // 8) * 8)
    grid = (pl.cdiv(n, bn),)  # ragged last block is masked by Pallas

    feat_spec = pl.BlockSpec((bn, c), lambda i: (i, 0))
    w_spec    = pl.BlockSpec((c, 3), lambda i: (0, 0))
    b_spec    = pl.BlockSpec((1, 3), lambda i: (0, 0))

    itemsize = jnp.dtype(p_feats.dtype).itemsize
    cost = pl.CostEstimate(
        flops=3 * 2 * n * c * 3 + 12 * n * c,          # 3 matmuls + fusion math
        transcendentals=3 * n,                          # exp
        bytes_accessed=4 * n * c * itemsize + 3 * c * 3 * 4 + 3 * 4,
    )

    return pl.pallas_call(
        _gfm_kernel,
        out_shape=jax.ShapeDtypeStruct((n, c), p_feats.dtype),
        grid=grid,
        in_specs=[feat_spec, feat_spec, feat_spec, w_spec, w_spec, w_spec, b_spec],
        out_specs=feat_spec,
        compiler_params=pltpu.CompilerParams(
            dimension_semantics=("parallel",)),
        cost_estimate=cost,
    )(r2p, p_feats, v2p, wr, wp, wv, bias.reshape(1, 3))


# ------------------------------ JAX glue ops ------------------------------ #

def voxel_to_point(v_feats, p2v_idx):
    # TODO(synk): original RPVNet uses trilinear devoxelization; nearest-voxel
    # gather used here.
    return v_feats[p2v_idx]


def range_to_point(r, px, py):
    # TODO(synk): original uses bilinear grid_sample; nearest-pixel gather here.
    _, c, h, w = r.shape
    flat = r[0].reshape(c, h * w)            # (C, H*W)
    return jnp.take(flat, py * w + px, axis=1).T   # (N, C)


def point_to_voxel(fuse, p2v_idx, num_voxels):
    sums = jax.ops.segment_sum(fuse, p2v_idx, num_segments=num_voxels)
    cnts = jax.ops.segment_sum(jnp.ones((fuse.shape[0], 1), fuse.dtype),
                               p2v_idx, num_segments=num_voxels)
    return sums / jnp.maximum(cnts, 1.0)


def point_to_range(hw, fuse, px, py):
    h, w = hw
    c = fuse.shape[1]
    img = jnp.zeros((c, h, w), fuse.dtype).at[:, py, px].add(fuse.T)
    cnt = jnp.zeros((1, h, w), fuse.dtype).at[:, py, px].add(1.0)
    return (img / jnp.maximum(cnt, 1.0))[None]  # (1, C, H, W)


# --------------------------- full GFM forward ----------------------------- #

def gfm_forward(r, p_feats, v_feats, px, py, p2v_idx, params, *, bn=2048):
    v2p = voxel_to_point(v_feats, p2v_idx)
    r2p = range_to_point(r, px, py)
    fuse = gfm_fuse_pallas(r2p, p_feats, v2p,
                           params["wr"], params["wp"], params["wv"],
                           params["bias"], bn=bn)
    v_new = point_to_voxel(fuse, p2v_idx, v_feats.shape[0])
    r_new = point_to_range(r.shape[-2:], fuse, px, py)
    return r_new, fuse, v_new


def gfm_fuse_ref(r2p, pf, v2p, wr, wp, wv, bias):
    logits = r2p @ wr + pf @ wp + v2p @ wv + bias
    w = jax.nn.softmax(logits, axis=-1)
    return r2p * w[:, 0:1] + pf * w[:, 1:2] + v2p * w[:, 2:3]


# ---------------------------------- main ----------------------------------- #

if __name__ == "__main__":
    key = jax.random.PRNGKey(0)
    N, C, H, W, M = 100, 32, 16, 16, 24  # points, channels, range H/W, voxels

    ks = jax.random.split(key, 10)
    r       = jax.random.normal(ks[0], (1, C, H, W), jnp.float32)   # NCHW range image
    p_feats = jax.random.normal(ks[1], (N, C), jnp.float32)
    v_feats = jax.random.normal(ks[2], (M, C), jnp.float32)
    px      = jax.random.randint(ks[3], (N,), 0, W)
    py      = jax.random.randint(ks[4], (N,), 0, H)
    p2v_idx = jax.random.randint(ks[5], (N,), 0, M)

    # deterministic parameters: nn.Linear(C, 3) weights stored transposed (C, 3)
    scale = 1.0 / jnp.sqrt(C)
    params = {
        "wr": jax.random.uniform(ks[6], (C, 3), jnp.float32, -scale, scale),
        "wp": jax.random.uniform(ks[7], (C, 3), jnp.float32, -scale, scale),
        "wv": jax.random.uniform(ks[8], (C, 3), jnp.float32, -scale, scale),
        # combined bias br + bp + bv
        "bias": jax.random.uniform(ks[9], (3,), jnp.float32, -scale, scale) * 3.0,
    }

    r_out, p_out, v_out = gfm_forward(r, p_feats, v_feats, px, py, p2v_idx, params)
    jax.block_until_ready((r_out, p_out, v_out))

    # sanity-check the Pallas hot path against a pure-JAX reference
    v2p = voxel_to_point(v_feats, p2v_idx)
    r2p = range_to_point(r, px, py)
    ref = gfm_fuse_ref(r2p, p_feats, v2p,
                       params["wr"], params["wp"], params["wv"], params["bias"])
    assert jnp.allclose(p_out, ref, rtol=1e-2, atol=1e-2), "fusion mismatch"

    # also exercise the multi-block + ragged-last-block path (grid > 1)
    p_small = gfm_fuse_pallas(r2p, p_feats, v2p,
                              params["wr"], params["wp"], params["wv"],
                              params["bias"], bn=64)
    jax.block_until_ready(p_small)
    assert jnp.allclose(p_small, ref, rtol=1e-2, atol=1e-2), "ragged-block mismatch"

    print("KERNEL_OK")
</pallas_src>

<mosaic_0001>
module attributes {stable_mosaic.version = 11 : i64} {
  func.func @_gfm_kernel(%arg0: i32, %arg1: memref<100x32xf32, #tpu.memory_space<vmem>>, %arg2: memref<100x32xf32, #tpu.memory_space<vmem>>, %arg3: memref<100x32xf32, #tpu.memory_space<vmem>>, %arg4: memref<32x3xf32, #tpu.memory_space<vmem>>, %arg5: memref<32x3xf32, #tpu.memory_space<vmem>>, %arg6: memref<32x3xf32, #tpu.memory_space<vmem>>, %arg7: memref<1x3xf32, #tpu.memory_space<vmem>>, %arg8: memref<100x32xf32, #tpu.memory_space<vmem>>) attributes {dimension_semantics = [#tpu.dimension_semantics<parallel>], iteration_bounds = array<i64: 1>, scalar_prefetch = 0 : i64, scratch_operands = 0 : i64, tpu.core_type = #tpu.core_type<tc>, window_params = [{transform_indices = @transform_0, window_bounds = array<i64: 100, 32>}, {transform_indices = @transform_1, window_bounds = array<i64: 100, 32>}, {transform_indices = @transform_2, window_bounds = array<i64: 100, 32>}, {pipeline_mode = #tpu.pipeline_mode<synchronous>, transform_indices = @transform_3, window_bounds = array<i64: 32, 3>}, {pipeline_mode = #tpu.pipeline_mode<synchronous>, transform_indices = @transform_4, window_bounds = array<i64: 32, 3>}, {pipeline_mode = #tpu.pipeline_mode<synchronous>, transform_indices = @transform_5, window_bounds = array<i64: 32, 3>}, {pipeline_mode = #tpu.pipeline_mode<synchronous>, transform_indices = @transform_6, window_bounds = array<i64: 1, 3>}, {transform_indices = @transform_7, window_bounds = array<i64: 100, 32>}]} {
    %c0 = arith.constant 0 : index
    %c0_0 = arith.constant 0 : index
    %0 = vector.load %arg1[%c0, %c0_0] : memref<100x32xf32, #tpu.memory_space<vmem>>, vector<100x32xf32>
    %c0_1 = arith.constant 0 : index
    %c0_2 = arith.constant 0 : index
    %1 = vector.load %arg2[%c0_1, %c0_2] : memref<100x32xf32, #tpu.memory_space<vmem>>, vector<100x32xf32>
    %c0_3 = arith.constant 0 : index
    %c0_4 = arith.constant 0 : index
    %2 = vector.load %arg3[%c0_3, %c0_4] : memref<100x32xf32, #tpu.memory_space<vmem>>, vector<100x32xf32>
    %c0_5 = arith.constant 0 : index
    %c0_6 = arith.constant 0 : index
    %3 = vector.load %arg4[%c0_5, %c0_6] : memref<32x3xf32, #tpu.memory_space<vmem>>, vector<32x3xf32>
    %cst = arith.constant dense<0.000000e+00> : vector<100x3xf32>
    %4 = tpu.matmul %0, %3, %cst {dimension_numbers = #tpu.dot_dimension_numbers<[1], [0], [0], [1], [0, 0, 1, 1], [], []>} : vector<100x32xf32>, vector<32x3xf32>, vector<100x3xf32> -> vector<100x3xf32>
    %c0_7 = arith.constant 0 : index
    %c0_8 = arith.constant 0 : index
    %5 = vector.load %arg5[%c0_7, %c0_8] : memref<32x3xf32, #tpu.memory_space<vmem>>, vector<32x3xf32>
    %cst_9 = arith.constant dense<0.000000e+00> : vector<100x3xf32>
    %6 = tpu.matmul %1, %5, %cst_9 {dimension_numbers = #tpu.dot_dimension_numbers<[1], [0], [0], [1], [0, 0, 1, 1], [], []>} : vector<100x32xf32>, vector<32x3xf32>, vector<100x3xf32> -> vector<100x3xf32>
    %7 = arith.addf %4, %6 : vector<100x3xf32>
    %c0_10 = arith.constant 0 : index
    %c0_11 = arith.constant 0 : index
    %8 = vector.load %arg6[%c0_10, %c0_11] : memref<32x3xf32, #tpu.memory_space<vmem>>, vector<32x3xf32>
    %cst_12 = arith.constant dense<0.000000e+00> : vector<100x3xf32>
    %9 = tpu.matmul %2, %8, %cst_12 {dimension_numbers = #tpu.dot_dimension_numbers<[1], [0], [0], [1], [0, 0, 1, 1], [], []>} : vector<100x32xf32>, vector<32x3xf32>, vector<100x3xf32> -> vector<100x3xf32>
    %10 = arith.addf %7, %9 : vector<100x3xf32>
    %c0_13 = arith.constant 0 : index
    %c0_14 = arith.constant 0 : index
    %11 = vector.load %arg7[%c0_13, %c0_14] : memref<1x3xf32, #tpu.memory_space<vmem>>, vector<1x3xf32>
    %12 = vector.broadcast %11 : vector<1x3xf32> to vector<100x3xf32>
    %13 = arith.addf %10, %12 : vector<100x3xf32>
    %cst_15 = arith.constant dense<0xFF800000> : vector<100xf32>
    %14 = vector.multi_reduction <maximumf>, %13, %cst_15 [1] : vector<100x3xf32> to vector<100xf32>
    %15 = vector.shape_cast %14 : vector<100xf32> to vector<100x1xf32>
    %16 = vector.broadcast %15 : vector<100x1xf32> to vector<100x3xf32>
    %17 = arith.subf %13, %16 : vector<100x3xf32>
    %18 = math.exp %17 : vector<100x3xf32>
    %cst_16 = arith.constant dense<0.000000e+00> : vector<100xf32>
    %19 = vector.multi_reduction <add>, %18, %cst_16 [1] : vector<100x3xf32> to vector<100xf32>
    %20 = vector.shape_cast %19 : vector<100xf32> to vector<100x1xf32>
    %21 = tpu.reciprocal %20 {approx = true} : vector<100x1xf32> -> vector<100x1xf32>
    %22 = vector.broadcast %21 : vector<100x1xf32> to vector<100x3xf32>
    %23 = arith.mulf %18, %22 : vector<100x3xf32>
    %24 = vector.extract_strided_slice %23 {offsets = [0, 0], sizes = [100, 1], strides = [1, 1]} : vector<100x3xf32> to vector<100x1xf32>
    %25 = vector.broadcast %24 : vector<100x1xf32> to vector<100x32xf32>
    %26 = arith.mulf %0, %25 : vector<100x32xf32>
    %27 = vector.extract_strided_slice %23 {offsets = [0, 1], sizes = [100, 1], strides = [1, 1]} : vector<100x3xf32> to vector<100x1xf32>
    %28 = vector.broadcast %27 : vector<100x1xf32> to vector<100x32xf32>
    %29 = arith.mulf %1, %28 : vector<100x32xf32>
    %30 = arith.addf %26, %29 : vector<100x32xf32>
    %31 = vector.extract_strided_slice %23 {offsets = [0, 2], sizes = [100, 1], strides = [1, 1]} : vector<100x3xf32> to vector<100x1xf32>
    %32 = vector.broadcast %31 : vector<100x1xf32> to vector<100x32xf32>
    %33 = arith.mulf %2, %32 : vector<100x32xf32>
    %34 = arith.addf %30, %33 : vector<100x32xf32>
    %c0_17 = arith.constant 0 : index
    %c0_18 = arith.constant 0 : index
    %35 = vector.load %arg8[%c0_17, %c0_18] : memref<100x32xf32, #tpu.memory_space<vmem>>, vector<100x32xf32>
    tpu.vector_store %arg8[%c0_17, %c0_18], %34 {strides = array<i32>} : memref<100x32xf32, #tpu.memory_space<vmem>>, vector<100x32xf32>,
    return
  }
  func.func @transform_0(%arg0: i32) -> (i32, i32) {
    %c0_i32 = arith.constant 0 : i32
    %c0_i32_0 = arith.constant 0 : i32
    return %arg0, %c0_i32 : i32, i32
  }
  func.func @transform_1(%arg0: i32) -> (i32, i32) {
    %c0_i32 = arith.constant 0 : i32
    %c0_i32_0 = arith.constant 0 : i32
    return %arg0, %c0_i32 : i32, i32
  }
  func.func @transform_2(%arg0: i32) -> (i32, i32) {
    %c0_i32 = arith.constant 0 : i32
    %c0_i32_0 = arith.constant 0 : i32
    return %arg0, %c0_i32 : i32, i32
  }
  func.func @transform_3(%arg0: i32) -> (i32, i32) {
    %c0_i32 = arith.constant 0 : i32
    %c0_i32_0 = arith.constant 0 : i32
    %c0_i32_1 = arith.constant 0 : i32
    return %c0_i32, %c0_i32_0 : i32, i32
  }
  func.func @transform_4(%arg0: i32) -> (i32, i32) {
    %c0_i32 = arith.constant 0 : i32
    %c0_i32_0 = arith.constant 0 : i32
    %c0_i32_1 = arith.constant 0 : i32
    return %c0_i32, %c0_i32_0 : i32, i32
  }
  func.func @transform_5(%arg0: i32) -> (i32, i32) {
    %c0_i32 = arith.constant 0 : i32
    %c0_i32_0 = arith.constant 0 : i32
    %c0_i32_1 = arith.constant 0 : i32
    return %c0_i32, %c0_i32_0 : i32, i32
  }
  func.func @transform_6(%arg0: i32) -> (i32, i32) {
    %c0_i32 = arith.constant 0 : i32
    %c0_i32_0 = arith.constant 0 : i32
    %c0_i32_1 = arith.constant 0 : i32
    return %c0_i32, %c0_i32_0 : i32, i32
  }
  func.func @transform_7(%arg0: i32) -> (i32, i32) {
    %c0_i32 = arith.constant 0 : i32
    %c0_i32_0 = arith.constant 0 : i32
    return %arg0, %c0_i32 : i32, i32
  }
}

</mosaic_0001>

<llo_original>
// kernel: tpu_custom_call.1
$region0: #{tpu_custom_call.1}
  #allocation0 [shape = 'u32[]', space=smem, size = 0x4, offset = 0x4, fixed_abs, tag = 'smem constant byte address 0x4 - core index']
  #allocation1 [shape = 'u32[72,128]{1,0:T(1,128)}', space=vmem, size = 0x9000, scoped, tag = 'internal scratch']
  %s0 = inlined_call_operand.vmem [shape: f32[100,32], index: 0, kind: input, shape index: {}]
  %s1 = inlined_call_operand.vmem [shape: f32[100,32], index: 1, kind: input, shape index: {}]
  %s2 = inlined_call_operand.vmem [shape: f32[100,32], index: 2, kind: input, shape index: {}]
  %s3 = inlined_call_operand.vmem [shape: f32[32,3], index: 3, kind: input, shape index: {}]
  %s4 = inlined_call_operand.vmem [shape: f32[32,3], index: 4, kind: input, shape index: {}]
  %s5 = inlined_call_operand.vmem [shape: f32[32,3], index: 5, kind: input, shape index: {}]
  %s6 = inlined_call_operand.vmem [shape: f32[1,3], index: 6, kind: input, shape index: {}]
  %s7 = inlined_call_operand.vmem [shape: f32[100,32], index: 7, kind: output, shape index: {}]
  %s8 = sld [smem:[#allocation0]]
  $region38: #{tpu_custom_call.1} parent=0
    _
  %s10 = ssub.s32 1, %s8
  %s11 = scalar_select 0, %s10, %s8
  // Predicated region
  $region2: #{tpu_custom_call.1} parent=0 // pred_check
    _
  $region3: #{tpu_custom_call.1} parent=0 // pred_check_branch
    %13 = sbr.rel (0) target = $region5
  $region4: #{tpu_custom_call.1} parent=0 // pred_region
    _
  $region5: #{tpu_custom_call.1} parent=0 // pred_fallthru
    _
  // Predicated region
  $region6: #{tpu_custom_call.1} parent=0 // pred_check
    _
  $region7: #{tpu_custom_call.1} parent=0 // pred_check_branch
    %15 = sbr.rel (0) target = $region9
  $region8: #{tpu_custom_call.1} parent=0 // pred_region
    _
  $region9: #{tpu_custom_call.1} parent=0 // pred_fallthru
    _
  // Predicated region
  $region10: #{tpu_custom_call.1} parent=0 // pred_check
    _
  $region11: #{tpu_custom_call.1} parent=0 // pred_check_branch
    %17 = sbr.rel (0) target = $region13
  $region12: #{tpu_custom_call.1} parent=0 // pred_region
    _
  $region13: #{tpu_custom_call.1} parent=0 // pred_fallthru
    _
  // Predicated region
  $region14: #{tpu_custom_call.1} parent=0 // pred_check
    _
  $region15: #{tpu_custom_call.1} parent=0 // pred_check_branch
    %19 = sbr.rel (0) target = $region17
  $region16: #{tpu_custom_call.1} parent=0 // pred_region
    _
  $region17: #{tpu_custom_call.1} parent=0 // pred_fallthru
    _
  // Predicated region
  $region18: #{tpu_custom_call.1} parent=0 // pred_check
    _
  $region19: #{tpu_custom_call.1} parent=0 // pred_check_branch
    %21 = sbr.rel (0) target = $region21
  $region20: #{tpu_custom_call.1} parent=0 // pred_region
    _
  $region21: #{tpu_custom_call.1} parent=0 // pred_fallthru
    _
  // Predicated region
  $region22: #{tpu_custom_call.1} parent=0 // pred_check
    _
  $region23: #{tpu_custom_call.1} parent=0 // pred_check_branch
    %23 = sbr.rel (0) target = $region25
  $region24: #{tpu_custom_call.1} parent=0 // pred_region
    _
  $region25: #{tpu_custom_call.1} parent=0 // pred_fallthru
    _
  // Predicated region
  $region26: #{tpu_custom_call.1} parent=0 // pred_check
    _
  $region27: #{tpu_custom_call.1} parent=0 // pred_check_branch
    %25 = sbr.rel (0) target = $region29
  $region28: #{tpu_custom_call.1} parent=0 // pred_region
    _
  $region29: #{tpu_custom_call.1} parent=0 // pred_fallthru
    _
  %v26 = vld [vmem:[%s0] sm:$0xff]
  %v27 = vld [vmem:[%s0 + $0x8] sm:$0xff]
  %v28 = vld [vmem:[%s0 + $0x10] sm:$0xff]
  %v29 = vld [vmem:[%s0 + $0x18] sm:$0xff]
  %v30 = vld [vmem:[%s0 + $0x20] sm:$0xff]
  %v31 = vld [vmem:[%s0 + $0x28] sm:$0xff]
  %v32 = vld [vmem:[%s0 + $0x30] sm:$0xff]
  %v33 = vld [vmem:[%s0 + $0x38] sm:$0xff]
  %v34 = vld [vmem:[%s0 + $0x40] sm:$0xff]
  %v35 = vld [vmem:[%s0 + $0x48] sm:$0xff]
  %v36 = vld [vmem:[%s0 + $0x50] sm:$0xff]
  %v37 = vld [vmem:[%s0 + $0x58] sm:$0xff]
  %v38 = vld [vmem:[%s0 + $0x60] sm:$0xf]
  %v39 = vld [vmem:[%s1] sm:$0xff]
  %v40 = vld [vmem:[%s1 + $0x8] sm:$0xff]
  %v41 = vld [vmem:[%s1 + $0x10] sm:$0xff]
  %v42 = vld [vmem:[%s1 + $0x18] sm:$0xff]
  %v43 = vld [vmem:[%s1 + $0x20] sm:$0xff]
  %v44 = vld [vmem:[%s1 + $0x28] sm:$0xff]
  %v45 = vld [vmem:[%s1 + $0x30] sm:$0xff]
  %v46 = vld [vmem:[%s1 + $0x38] sm:$0xff]
  %v47 = vld [vmem:[%s1 + $0x40] sm:$0xff]
  %v48 = vld [vmem:[%s1 + $0x48] sm:$0xff]
  %v49 = vld [vmem:[%s1 + $0x50] sm:$0xff]
  %v50 = vld [vmem:[%s1 + $0x58] sm:$0xff]
  %v51 = vld [vmem:[%s1 + $0x60] sm:$0xf]
  %v52 = vld [vmem:[%s2] sm:$0xff]
  %v53 = vld [vmem:[%s2 + $0x8] sm:$0xff]
  %v54 = vld [vmem:[%s2 + $0x10] sm:$0xff]
  %v55 = vld [vmem:[%s2 + $0x18] sm:$0xff]
  %v56 = vld [vmem:[%s2 + $0x20] sm:$0xff]
  %v57 = vld [vmem:[%s2 + $0x28] sm:$0xff]
  %v58 = vld [vmem:[%s2 + $0x30] sm:$0xff]
  %v59 = vld [vmem:[%s2 + $0x38] sm:$0xff]
  %v60 = vld [vmem:[%s2 + $0x40] sm:$0xff]
  %v61 = vld [vmem:[%s2 + $0x48] sm:$0xff]
  %v62 = vld [vmem:[%s2 + $0x50] sm:$0xff]
  %v63 = vld [vmem:[%s2 + $0x58] sm:$0xff]
  %v64 = vld [vmem:[%s2 + $0x60] sm:$0xf]
  %v65 = vld [vmem:[%s3] sm:$0xff]
  %v66 = vld [vmem:[%s3 + $0x8] sm:$0xff]
  %v67 = vld [vmem:[%s3 + $0x10] sm:$0xff]
  %v68 = vld [vmem:[%s3 + $0x18] sm:$0xff]
  %v69 = vld [vmem:[%s4] sm:$0xff]
  %v70 = vld [vmem:[%s4 + $0x8] sm:$0xff]
  %v71 = vld [vmem:[%s4 + $0x10] sm:$0xff]
  %v72 = vld [vmem:[%s4 + $0x18] sm:$0xff]
  %vm73 = vcmask 261120
  %v75 = vsel %vm73, %v39, 0
  %v78 = vsel %vm73, %v40, 0
  %v81 = vsel %vm73, %v41, 0
  %v84 = vsel %vm73, %v42, 0
  %v87 = vsel %vm73, %v43, 0
  %v90 = vsel %vm73, %v44, 0
  %v93 = vsel %vm73, %v45, 0
  %v96 = vsel %vm73, %v46, 0
  %v99 = vsel %vm73, %v47, 0
  %v102 = vsel %vm73, %v48, 0
  %v105 = vsel %vm73, %v49, 0
  %v108 = vsel %vm73, %v50, 0
  %v111 = vsel %vm73, %v51, 0
  %113 = vmatpush.msra.mxu0 0.0
  %114 = vmatpush.msra.mxu0 0.0
  %115 = vmatpush.msra.mxu0 0.0
  %116 = vmatpush.msra.mxu0 0.0
  %117 = vmatpush.msra.mxu0 0.0
  %118 = vmatpush.msra.mxu0 0.0
  %119 = vmatpush.msra.mxu0 0.0
  %120 = vmatpush.msra.mxu0 0.0
  %121 = vmatpush.msra.mxu0 0.0
  %122 = vmatpush.msra.mxu0 0.0
  %123 = vmatpush.msra.mxu0 0.0
  %124 = vmatpush.msra.mxu0 0.0
  %125 = vmatpush.msra.mxu0 %v72
  %126 = vmatpush.msra.mxu0 %v71
  %127 = vmatpush.msra.mxu0 %v70
  %128 = vmatpush.msra.mxu0 %v69
  %129 = vmatmul.f32.gmra.mxu0 %v75
  %v130 = vpop.f32.mrf.mxu0
  %v131 = vadd.f32 0.0, %v130
  %132 = vmatmul.f32.gmra.mxu0 %v78
  %v133 = vpop.f32.mrf.mxu0
  %v134 = vadd.f32 0.0, %v133
  %135 = vmatmul.f32.gmra.mxu0 %v81
  %v136 = vpop.f32.mrf.mxu0
  %v137 = vadd.f32 0.0, %v136
  %138 = vmatmul.f32.gmra.mxu0 %v84
  %v139 = vpop.f32.mrf.mxu0
  %v140 = vadd.f32 0.0, %v139
  %141 = vmatmul.f32.gmra.mxu0 %v87
  %v142 = vpop.f32.mrf.mxu0
  %v143 = vadd.f32 0.0, %v142
  %144 = vmatmul.f32.gmra.mxu0 %v90
  %v145 = vpop.f32.mrf.mxu0
  %v146 = vadd.f32 0.0, %v145
  %147 = vmatmul.f32.gmra.mxu0 %v93
  %v148 = vpop.f32.mrf.mxu0
  %v149 = vadd.f32 0.0, %v148
  %150 = vmatmul.f32.gmra.mxu0 %v96
  %v151 = vpop.f32.mrf.mxu0
  %v152 = vadd.f32 0.0, %v151
  %153 = vmatmul.f32.gmra.mxu0 %v99
  %v154 = vpop.f32.mrf.mxu0
  %v155 = vadd.f32 0.0, %v154
  %156 = vmatmul.f32.gmra.mxu0 %v102
  %v157 = vpop.f32.mrf.mxu0
  %v158 = vadd.f32 0.0, %v157
  %159 = vmatmul.f32.gmra.mxu0 %v105
  %v160 = vpop.f32.mrf.mxu0
  %v161 = vadd.f32 0.0, %v160
  %162 = vmatmul.f32.gmra.mxu0 %v108
  %v163 = vpop.f32.mrf.mxu0
  %v164 = vadd.f32 0.0, %v163
  %165 = vmatmul.f32.gmra.mxu0 %v111
  %v166 = vpop.f32.mrf.mxu0
  %v167 = vadd.f32 0.0, %v166
  %168 = vdwg.mxu0
  %v170 = vsel %vm73, %v26, 0
  %v173 = vsel %vm73, %v27, 0
  %v176 = vsel %vm73, %v28, 0
  %v179 = vsel %vm73, %v29, 0
  %v182 = vsel %vm73, %v30, 0
  %v185 = vsel %vm73, %v31, 0
  %v188 = vsel %vm73, %v32, 0
  %v191 = vsel %vm73, %v33, 0
  %v194 = vsel %vm73, %v34, 0
  %v197 = vsel %vm73, %v35, 0
  %v200 = vsel %vm73, %v36, 0
  %v203 = vsel %vm73, %v37, 0
  %v206 = vsel %vm73, %v38, 0
  %208 = vmatpush.msra.mxu0 0.0
  %209 = vmatpush.msra.mxu0 0.0
  %210 = vmatpush.msra.mxu0 0.0
  %211 = vmatpush.msra.mxu0 0.0
  %212 = vmatpush.msra.mxu0 0.0
  %213 = vmatpush.msra.mxu0 0.0
  %214 = vmatpush.msra.mxu0 0.0
  %215 = vmatpush.msra.mxu0 0.0
  %216 = vmatpush.msra.mxu0 0.0
  %217 = vmatpush.msra.mxu0 0.0
  %218 = vmatpush.msra.mxu0 0.0
  %219 = vmatpush.msra.mxu0 0.0
  %220 = vmatpush.msra.mxu0 %v68
  %221 = vmatpush.msra.mxu0 %v67
  %222 = vmatpush.msra.mxu0 %v66
  %223 = vmatpush.msra.mxu0 %v65
  %224 = vmatmul.f32.gmra.mxu0 %v170
  %v225 = vpop.f32.mrf.mxu0
  %v226 = vadd.f32 %v131, %v225
  %227 = vmatmul.f32.gmra.mxu0 %v173
  %v228 = vpop.f32.mrf.mxu0
  %v229 = vadd.f32 %v134, %v228
  %230 = vmatmul.f32.gmra.mxu0 %v176
  %v231 = vpop.f32.mrf.mxu0
  %v232 = vadd.f32 %v137, %v231
  %233 = vmatmul.f32.gmra.mxu0 %v179
  %v234 = vpop.f32.mrf.mxu0
  %v235 = vadd.f32 %v140, %v234
  %236 = vmatmul.f32.gmra.mxu0 %v182
  %v237 = vpop.f32.mrf.mxu0
  %v238 = vadd.f32 %v143, %v237
  %239 = vmatmul.f32.gmra.mxu0 %v185
  %v240 = vpop.f32.mrf.mxu0
  %v241 = vadd.f32 %v146, %v240
  %242 = vmatmul.f32.gmra.mxu0 %v188
  %v243 = vpop.f32.mrf.mxu0
  %v244 = vadd.f32 %v149, %v243
  %245 = vmatmul.f32.gmra.mxu0 %v191
  %v246 = vpop.f32.mrf.mxu0
  %v247 = vadd.f32 %v152, %v246
  %248 = vmatmul.f32.gmra.mxu0 %v194
  %v249 = vpop.f32.mrf.mxu0
  %v250 = vadd.f32 %v155, %v249
  %251 = vmatmul.f32.gmra.mxu0 %v197
  %v252 = vpop.f32.mrf.mxu0
  %v253 = vadd.f32 %v158, %v252
  %254 = vmatmul.f32.gmra.mxu0 %v200
  %v255 = vpop.f32.mrf.mxu0
  %v256 = vadd.f32 %v161, %v255
  %257 = vmatmul.f32.gmra.mxu0 %v203
  %v258 = vpop.f32.mrf.mxu0
  %v259 = vadd.f32 %v164, %v258
  %260 = vmatmul.f32.gmra.mxu0 %v206
  %v261 = vpop.f32.mrf.mxu0
  %v262 = vadd.f32 %v167, %v261
  %263 = vdwg.mxu0
  %v264 = vld [vmem:[%s5] sm:$0xff]
  %v265 = vld [vmem:[%s5 + $0x8] sm:$0xff]
  %v266 = vld [vmem:[%s5 + $0x10] sm:$0xff]
  %v267 = vld [vmem:[%s5 + $0x18] sm:$0xff]
  %v269 = vsel %vm73, %v52, 0
  %v272 = vsel %vm73, %v53, 0
  %v275 = vsel %vm73, %v54, 0
  %v278 = vsel %vm73, %v55, 0
  %v281 = vsel %vm73, %v56, 0
  %v284 = vsel %vm73, %v57, 0
  %v287 = vsel %vm73, %v58, 0
  %v290 = vsel %vm73, %v59, 0
  %v293 = vsel %vm73, %v60, 0
  %v296 = vsel %vm73, %v61, 0
  %v299 = vsel %vm73, %v62, 0
  %v302 = vsel %vm73, %v63, 0
  %v305 = vsel %vm73, %v64, 0
  %307 = vmatpush.msra.mxu0 0.0
  %308 = vmatpush.msra.mxu0 0.0
  %309 = vmatpush.msra.mxu0 0.0
  %310 = vmatpush.msra.mxu0 0.0
  %311 = vmatpush.msra.mxu0 0.0
  %312 = vmatpush.msra.mxu0 0.0
  %313 = vmatpush.msra.mxu0 0.0
  %314 = vmatpush.msra.mxu0 0.0
  %315 = vmatpush.msra.mxu0 0.0
  %316 = vmatpush.msra.mxu0 0.0
  %317 = vmatpush.msra.mxu0 0.0
  %318 = vmatpush.msra.mxu0 0.0
  %319 = vmatpush.msra.mxu0 %v267
  %320 = vmatpush.msra.mxu0 %v266
  %321 = vmatpush.msra.mxu0 %v265
  %322 = vmatpush.msra.mxu0 %v264
  %323 = vmatmul.f32.gmra.mxu0 %v269
  %v324 = vpop.f32.mrf.mxu0
  %v325 = vadd.f32 0.0, %v324
  %326 = vmatmul.f32.gmra.mxu0 %v272
  %v327 = vpop.f32.mrf.mxu0
  %v328 = vadd.f32 0.0, %v327
  %329 = vmatmul.f32.gmra.mxu0 %v275
  %v330 = vpop.f32.mrf.mxu0
  %v331 = vadd.f32 0.0, %v330
  %332 = vmatmul.f32.gmra.mxu0 %v278
  %v333 = vpop.f32.mrf.mxu0
  %v334 = vadd.f32 0.0, %v333
  %335 = vmatmul.f32.gmra.mxu0 %v281
  %v336 = vpop.f32.mrf.mxu0
  %v337 = vadd.f32 0.0, %v336
  %338 = vmatmul.f32.gmra.mxu0 %v284
  %v339 = vpop.f32.mrf.mxu0
  %v340 = vadd.f32 0.0, %v339
  %341 = vmatmul.f32.gmra.mxu0 %v287
  %v342 = vpop.f32.mrf.mxu0
  %v343 = vadd.f32 0.0, %v342
  %344 = vmatmul.f32.gmra.mxu0 %v290
  %v345 = vpop.f32.mrf.mxu0
  %v346 = vadd.f32 0.0, %v345
  %347 = vmatmul.f32.gmra.mxu0 %v293
  %v348 = vpop.f32.mrf.mxu0
  %v349 = vadd.f32 0.0, %v348
  %350 = vmatmul.f32.gmra.mxu0 %v296
  %v351 = vpop.f32.mrf.mxu0
  %v352 = vadd.f32 0.0, %v351
  %353 = vmatmul.f32.gmra.mxu0 %v299
  %v354 = vpop.f32.mrf.mxu0
  %v355 = vadd.f32 0.0, %v354
  %356 = vmatmul.f32.gmra.mxu0 %v302
  %v357 = vpop.f32.mrf.mxu0
  %v358 = vadd.f32 0.0, %v357
  %359 = vmatmul.f32.gmra.mxu0 %v305
  %v360 = vpop.f32.mrf.mxu0
  %v361 = vadd.f32 0.0, %v360
  %362 = vdwg.mxu0
  %v363 = vadd.f32 %v226, %v325
  %v364 = vadd.f32 %v229, %v328
  %v365 = vadd.f32 %v232, %v331
  %v366 = vadd.f32 %v235, %v334
  %v367 = vadd.f32 %v238, %v337
  %v368 = vadd.f32 %v241, %v340
  %v369 = vadd.f32 %v244, %v343
  %v370 = vadd.f32 %v247, %v346
  %v371 = vadd.f32 %v250, %v349
  %v372 = vadd.f32 %v253, %v352
  %v373 = vadd.f32 %v256, %v355
  %v374 = vadd.f32 %v259, %v358
  %v375 = vadd.f32 %v262, %v361
  %v376 = vld [vmem:[%s6] sm:$0x1]
  %v378 = vperm.slane %v376, 0
  %v380 = vadd.f32 %v363, %v378
  %v381 = vadd.f32 %v364, %v378
  %v382 = vadd.f32 %v365, %v378
  %v383 = vadd.f32 %v366, %v378
  %v384 = vadd.f32 %v367, %v378
  %v385 = vadd.f32 %v368, %v378
  %v386 = vadd.f32 %v369, %v378
  %v387 = vadd.f32 %v370, %v378
  %v388 = vadd.f32 %v371, %v378
  %v389 = vadd.f32 %v372, %v378
  %v390 = vadd.f32 %v373, %v378
  %v391 = vadd.f32 %v374, %v378
  %v392 = vadd.f32 %v375, %v378
  %vm393 = vcmask 23552
  %v394 = vsel %vm393, %v380, -inf
  %395 = vmax.xlane.f32.xlu0 %v394
  %v396 = vpop.xlane.xlu0 %395
  %v397 = vsel %vm393, %v381, -inf
  %398 = vmax.xlane.f32.xlu0 %v397
  %v399 = vpop.xlane.xlu0 %398
  %v400 = vsel %vm393, %v382, -inf
  %401 = vmax.xlane.f32.xlu0 %v400
  %v402 = vpop.xlane.xlu0 %401
  %v403 = vsel %vm393, %v383, -inf
  %404 = vmax.xlane.f32.xlu0 %v403
  %v405 = vpop.xlane.xlu0 %404
  %v406 = vsel %vm393, %v384, -inf
  %407 = vmax.xlane.f32.xlu0 %v406
  %v408 = vpop.xlane.xlu0 %407
  %v409 = vsel %vm393, %v385, -inf
  %410 = vmax.xlane.f32.xlu0 %v409
  %v411 = vpop.xlane.xlu0 %410
  %v412 = vsel %vm393, %v386, -inf
  %413 = vmax.xlane.f32.xlu0 %v412
  %v414 = vpop.xlane.xlu0 %413
  %v415 = vsel %vm393, %v387, -inf
  %416 = vmax.xlane.f32.xlu0 %v415
  %v417 = vpop.xlane.xlu0 %416
  %v418 = vsel %vm393, %v388, -inf
  %419 = vmax.xlane.f32.xlu0 %v418
  %v420 = vpop.xlane.xlu0 %419
  %v421 = vsel %vm393, %v389, -inf
  %422 = vmax.xlane.f32.xlu0 %v421
  %v423 = vpop.xlane.xlu0 %422
  %v424 = vsel %vm393, %v390, -inf
  %425 = vmax.xlane.f32.xlu0 %v424
  %v426 = vpop.xlane.xlu0 %425
  %v427 = vsel %vm393, %v391, -inf
  %428 = vmax.xlane.f32.xlu0 %v427
  %v429 = vpop.xlane.xlu0 %428
  %vm430 = vcmask 19456
  %v431 = vsel %vm430, %v392, -inf
  %432 = vmax.xlane.f32.xlu0 %v431
  %v433 = vpop.xlane.xlu0 %432
  %v434 = vsub.f32 %v380, %v396
  %v435 = vsub.f32 %v381, %v399
  %v436 = vsub.f32 %v382, %v402
  %v437 = vsub.f32 %v383, %v405
  %v438 = vsub.f32 %v384, %v408
  %v439 = vsub.f32 %v385, %v411
  %v440 = vsub.f32 %v386, %v414
  %v441 = vsub.f32 %v387, %v417
  %v442 = vsub.f32 %v388, %v420
  %v443 = vsub.f32 %v389, %v423
  %v444 = vsub.f32 %v390, %v426
  %v445 = vsub.f32 %v391, %v429
  %v446 = vsub.f32 %v392, %v433
  %v447 = vmul.f32 %v434, 1.442695
  %v448 = vpow.pop %v447
  %v449 = vmul.f32 %v435, 1.442695
  %v450 = vpow.pop %v449
  %v451 = vmul.f32 %v436, 1.442695
  %v452 = vpow.pop %v451
  %v453 = vmul.f32 %v437, 1.442695
  %v454 = vpow.pop %v453
  %v455 = vmul.f32 %v438, 1.442695
  %v456 = vpow.pop %v455
  %v457 = vmul.f32 %v439, 1.442695
  %v458 = vpow.pop %v457
  %v459 = vmul.f32 %v440, 1.442695
  %v460 = vpow.pop %v459
  %v461 = vmul.f32 %v441, 1.442695
  %v462 = vpow.pop %v461
  %v463 = vmul.f32 %v442, 1.442695
  %v464 = vpow.pop %v463
  %v465 = vmul.f32 %v443, 1.442695
  %v466 = vpow.pop %v465
  %v467 = vmul.f32 %v444, 1.442695
  %v468 = vpow.pop %v467
  %v469 = vmul.f32 %v445, 1.442695
  %v470 = vpow.pop %v469
  %v471 = vmul.f32 %v446, 1.442695
  %v472 = vpow.pop %v471
  %v473 = vsel %vm393, %v448, 0.0
  %474 = vadd.xlane.f32.xlu0 %v473
  %v475 = vpop.xlane.xlu0 %474
  %v476 = vsel %vm393, %v450, 0.0
  %477 = vadd.xlane.f32.xlu0 %v476
  %v478 = vpop.xlane.xlu0 %477
  %v479 = vsel %vm393, %v452, 0.0
  %480 = vadd.xlane.f32.xlu0 %v479
  %v481 = vpop.xlane.xlu0 %480
  %v482 = vsel %vm393, %v454, 0.0
  %483 = vadd.xlane.f32.xlu0 %v482
  %v484 = vpop.xlane.xlu0 %483
  %v485 = vsel %vm393, %v456, 0.0
  %486 = vadd.xlane.f32.xlu0 %v485
  %v487 = vpop.xlane.xlu0 %486
  %v488 = vsel %vm393, %v458, 0.0
  %489 = vadd.xlane.f32.xlu0 %v488
  %v490 = vpop.xlane.xlu0 %489
  %v491 = vsel %vm393, %v460, 0.0
  %492 = vadd.xlane.f32.xlu0 %v491
  %v493 = vpop.xlane.xlu0 %492
  %v494 = vsel %vm393, %v462, 0.0
  %495 = vadd.xlane.f32.xlu0 %v494
  %v496 = vpop.xlane.xlu0 %495
  %v497 = vsel %vm393, %v464, 0.0
  %498 = vadd.xlane.f32.xlu0 %v497
  %v499 = vpop.xlane.xlu0 %498
  %v500 = vsel %vm393, %v466, 0.0
  %501 = vadd.xlane.f32.xlu0 %v500
  %v502 = vpop.xlane.xlu0 %501
  %v503 = vsel %vm393, %v468, 0.0
  %504 = vadd.xlane.f32.xlu0 %v503
  %v505 = vpop.xlane.xlu0 %504
  %v506 = vsel %vm393, %v470, 0.0
  %507 = vadd.xlane.f32.xlu0 %v506
  %v508 = vpop.xlane.xlu0 %507
  %v509 = vsel %vm430, %v472, 0.0
  %510 = vadd.xlane.f32.xlu0 %v509
  %v511 = vpop.xlane.xlu0 %510
  %v512 = vrcp.pop %v475
  %v513 = vrcp.pop %v478
  %v514 = vrcp.pop %v481
  %v515 = vrcp.pop %v484
  %v516 = vrcp.pop %v487
  %v517 = vrcp.pop %v490
  %v518 = vrcp.pop %v493
  %v519 = vrcp.pop %v496
  %v520 = vrcp.pop %v499
  %v521 = vrcp.pop %v502
  %v522 = vrcp.pop %v505
  %v523 = vrcp.pop %v508
  %v524 = vrcp.pop %v511
  %v525 = vmul.f32 %v448, %v512
  %v526 = vmul.f32 %v450, %v513
  %v527 = vmul.f32 %v452, %v514
  %v528 = vmul.f32 %v454, %v515
  %v529 = vmul.f32 %v456, %v516
  %v530 = vmul.f32 %v458, %v517
  %v531 = vmul.f32 %v460, %v518
  %v532 = vmul.f32 %v462, %v519
  %v533 = vmul.f32 %v464, %v520
  %v534 = vmul.f32 %v466, %v521
  %v535 = vmul.f32 %v468, %v522
  %v536 = vmul.f32 %v470, %v523
  %v537 = vmul.f32 %v472, %v524
  %539 = vset.pattern.permute.xlu0 0
  %540 = vperm.xlu0 %539, %v525
  %v541 = vpop.permute.xlu0 %540
  %544 = vset.pattern.permute.xlu0 0
  %545 = vperm.xlu0 %544, %v526
  %v546 = vpop.permute.xlu0 %545
  %549 = vset.pattern.permute.xlu0 0
  %550 = vperm.xlu0 %549, %v527
  %v551 = vpop.permute.xlu0 %550
  %554 = vset.pattern.permute.xlu0 0
  %555 = vperm.xlu0 %554, %v528
  %v556 = vpop.permute.xlu0 %555
  %559 = vset.pattern.permute.xlu0 0
  %560 = vperm.xlu0 %559, %v529
  %v561 = vpop.permute.xlu0 %560
  %564 = vset.pattern.permute.xlu0 0
  %565 = vperm.xlu0 %564, %v530
  %v566 = vpop.permute.xlu0 %565
  %569 = vset.pattern.permute.xlu0 0
  %570 = vperm.xlu0 %569, %v531
  %v571 = vpop.permute.xlu0 %570
  %574 = vset.pattern.permute.xlu0 0
  %575 = vperm.xlu0 %574, %v532
  %v576 = vpop.permute.xlu0 %575
  %579 = vset.pattern.permute.xlu0 0
  %580 = vperm.xlu0 %579, %v533
  %v581 = vpop.permute.xlu0 %580
  %584 = vset.pattern.permute.xlu0 0
  %585 = vperm.xlu0 %584, %v534
  %v586 = vpop.permute.xlu0 %585
  %589 = vset.pattern.permute.xlu0 0
  %590 = vperm.xlu0 %589, %v535
  %v591 = vpop.permute.xlu0 %590
  %594 = vset.pattern.permute.xlu0 0
  %595 = vperm.xlu0 %594, %v536
  %v596 = vpop.permute.xlu0 %595
  %599 = vset.pattern.permute.xlu0 0
  %600 = vperm.xlu0 %599, %v537
  %v601 = vpop.permute.xlu0 %600
  %v603 = vmul.f32 %v26, %v541
  %v604 = vmul.f32 %v27, %v546
  %v605 = vmul.f32 %v28, %v551
  %v606 = vmul.f32 %v29, %v556
  %v607 = vmul.f32 %v30, %v561
  %v608 = vmul.f32 %v31, %v566
  %v609 = vmul.f32 %v32, %v571
  %v610 = vmul.f32 %v33, %v576
  %v611 = vmul.f32 %v34, %v581
  %v612 = vmul.f32 %v35, %v586
  %v613 = vmul.f32 %v36, %v591
  %v614 = vmul.f32 %v37, %v596
  %v615 = vmul.f32 %v38, %v601
  %616 = vset.pattern.permute.xlu0 1
  %617 = vperm.xlu0 %616, %v525
  %v618 = vpop.permute.xlu0 %617
  %620 = vset.pattern.permute.xlu0 1
  %621 = vperm.xlu0 %620, %v526
  %v622 = vpop.permute.xlu0 %621
  %624 = vset.pattern.permute.xlu0 1
  %625 = vperm.xlu0 %624, %v527
  %v626 = vpop.permute.xlu0 %625
  %628 = vset.pattern.permute.xlu0 1
  %629 = vperm.xlu0 %628, %v528
  %v630 = vpop.permute.xlu0 %629
  %632 = vset.pattern.permute.xlu0 1
  %633 = vperm.xlu0 %632, %v529
  %v634 = vpop.permute.xlu0 %633
  %636 = vset.pattern.permute.xlu0 1
  %637 = vperm.xlu0 %636, %v530
  %v638 = vpop.permute.xlu0 %637
  %640 = vset.pattern.permute.xlu0 1
  %641 = vperm.xlu0 %640, %v531
  %v642 = vpop.permute.xlu0 %641
  %644 = vset.pattern.permute.xlu0 1
  %645 = vperm.xlu0 %644, %v532
  %v646 = vpop.permute.xlu0 %645
  %648 = vset.pattern.permute.xlu0 1
  %649 = vperm.xlu0 %648, %v533
  %v650 = vpop.permute.xlu0 %649
  %652 = vset.pattern.permute.xlu0 1
  %653 = vperm.xlu0 %652, %v534
  %v654 = vpop.permute.xlu0 %653
  %656 = vset.pattern.permute.xlu0 1
  %657 = vperm.xlu0 %656, %v535
  %v658 = vpop.permute.xlu0 %657
  %660 = vset.pattern.permute.xlu0 1
  %661 = vperm.xlu0 %660, %v536
  %v662 = vpop.permute.xlu0 %661
  %664 = vset.pattern.permute.xlu0 1
  %665 = vperm.xlu0 %664, %v537
  %v666 = vpop.permute.xlu0 %665
  %v668 = vmul.f32 %v39, %v618
  %v669 = vmul.f32 %v40, %v622
  %v670 = vmul.f32 %v41, %v626
  %v671 = vmul.f32 %v42, %v630
  %v672 = vmul.f32 %v43, %v634
  %v673 = vmul.f32 %v44, %v638
  %v674 = vmul.f32 %v45, %v642
  %v675 = vmul.f32 %v46, %v646
  %v676 = vmul.f32 %v47, %v650
  %v677 = vmul.f32 %v48, %v654
  %v678 = vmul.f32 %v49, %v658
  %v679 = vmul.f32 %v50, %v662
  %v680 = vmul.f32 %v51, %v666
  %v681 = vadd.f32 %v603, %v668
  %v682 = vadd.f32 %v604, %v669
  %v683 = vadd.f32 %v605, %v670
  %v684 = vadd.f32 %v606, %v671
  %v685 = vadd.f32 %v607, %v672
  %v686 = vadd.f32 %v608, %v673
  %v687 = vadd.f32 %v609, %v674
  %v688 = vadd.f32 %v610, %v675
  %v689 = vadd.f32 %v611, %v676
  %v690 = vadd.f32 %v612, %v677
  %v691 = vadd.f32 %v613, %v678
  %v692 = vadd.f32 %v614, %v679
  %v693 = vadd.f32 %v615, %v680
  %694 = vset.pattern.permute.xlu0 2
  %695 = vperm.xlu0 %694, %v525
  %v696 = vpop.permute.xlu0 %695
  %698 = vset.pattern.permute.xlu0 2
  %699 = vperm.xlu0 %698, %v526
  %v700 = vpop.permute.xlu0 %699
  %702 = vset.pattern.permute.xlu0 2
  %703 = vperm.xlu0 %702, %v527
  %v704 = vpop.permute.xlu0 %703
  %706 = vset.pattern.permute.xlu0 2
  %707 = vperm.xlu0 %706, %v528
  %v708 = vpop.permute.xlu0 %707
  %710 = vset.pattern.permute.xlu0 2
  %711 = vperm.xlu0 %710, %v529
  %v712 = vpop.permute.xlu0 %711
  %714 = vset.pattern.permute.xlu0 2
  %715 = vperm.xlu0 %714, %v530
  %v716 = vpop.permute.xlu0 %715
  %718 = vset.pattern.permute.xlu0 2
  %719 = vperm.xlu0 %718, %v531
  %v720 = vpop.permute.xlu0 %719
  %722 = vset.pattern.permute.xlu0 2
  %723 = vperm.xlu0 %722, %v532
  %v724 = vpop.permute.xlu0 %723
  %726 = vset.pattern.permute.xlu0 2
  %727 = vperm.xlu0 %726, %v533
  %v728 = vpop.permute.xlu0 %727
  %730 = vset.pattern.permute.xlu0 2
  %731 = vperm.xlu0 %730, %v534
  %v732 = vpop.permute.xlu0 %731
  %734 = vset.pattern.permute.xlu0 2
  %735 = vperm.xlu0 %734, %v535
  %v736 = vpop.permute.xlu0 %735
  %738 = vset.pattern.permute.xlu0 2
  %739 = vperm.xlu0 %738, %v536
  %v740 = vpop.permute.xlu0 %739
  %742 = vset.pattern.permute.xlu0 2
  %743 = vperm.xlu0 %742, %v537
  %v744 = vpop.permute.xlu0 %743
  %v746 = vmul.f32 %v52, %v696
  %v747 = vmul.f32 %v53, %v700
  %v748 = vmul.f32 %v54, %v704
  %v749 = vmul.f32 %v55, %v708
  %v750 = vmul.f32 %v56, %v712
  %v751 = vmul.f32 %v57, %v716
  %v752 = vmul.f32 %v58, %v720
  %v753 = vmul.f32 %v59, %v724
  %v754 = vmul.f32 %v60, %v728
  %v755 = vmul.f32 %v61, %v732
  %v756 = vmul.f32 %v62, %v736
  %v757 = vmul.f32 %v63, %v740
  %v758 = vmul.f32 %v64, %v744
  %v759 = vadd.f32 %v681, %v746
  %v760 = vadd.f32 %v682, %v747
  %v761 = vadd.f32 %v683, %v748
  %v762 = vadd.f32 %v684, %v749
  %v763 = vadd.f32 %v685, %v750
  %v764 = vadd.f32 %v686, %v751
  %v765 = vadd.f32 %v687, %v752
  %v766 = vadd.f32 %v688, %v753
  %v767 = vadd.f32 %v689, %v754
  %v768 = vadd.f32 %v690, %v755
  %v769 = vadd.f32 %v691, %v756
  %v770 = vadd.f32 %v692, %v757
  %v771 = vadd.f32 %v693, %v758
  %772 = vst.msk [vmem:[%s7] sm:$0xff] %vm73, %v759
  %773 = vst.msk [vmem:[%s7 + $0x8] sm:$0xff] %vm73, %v760
  %774 = vst.msk [vmem:[%s7 + $0x10] sm:$0xff] %vm73, %v761
  %775 = vst.msk [vmem:[%s7 + $0x18] sm:$0xff] %vm73, %v762
  %776 = vst.msk [vmem:[%s7 + $0x20] sm:$0xff] %vm73, %v763
  %777 = vst.msk [vmem:[%s7 + $0x28] sm:$0xff] %vm73, %v764
  %778 = vst.msk [vmem:[%s7 + $0x30] sm:$0xff] %vm73, %v765
  %779 = vst.msk [vmem:[%s7 + $0x38] sm:$0xff] %vm73, %v766
  %780 = vst.msk [vmem:[%s7 + $0x40] sm:$0xff] %vm73, %v767
  %781 = vst.msk [vmem:[%s7 + $0x48] sm:$0xff] %vm73, %v768
  %782 = vst.msk [vmem:[%s7 + $0x50] sm:$0xff] %vm73, %v769
  %783 = vst.msk [vmem:[%s7 + $0x58] sm:$0xff] %vm73, %v770
  %vm784 = vcmask 257024
  %785 = vst.msk [vmem:[%s7 + $0x60] sm:$0xf] %vm784, %v771
  // Predicated region
  $region30: #{tpu_custom_call.1} parent=0 // pred_check
    _
  $region31: #{tpu_custom_call.1} parent=0 // pred_check_branch
    %787 = sbr.rel (0) target = $region33
  $region32: #{tpu_custom_call.1} parent=0 // pred_region
    _
  $region33: #{tpu_custom_call.1} parent=0 // pred_fallthru
    _
  // Predicated region
  $region34: #{tpu_custom_call.1} parent=0 // pred_check
    _
  $region35: #{tpu_custom_call.1} parent=0 // pred_check_branch
    %789 = sbr.rel (0) target = $region37
  $region36: #{tpu_custom_call.1} parent=0 // pred_region
    _
  $region37: #{tpu_custom_call.1} parent=0 // pred_fallthru
    _

</llo_original>
